<compile_context>
chip_gen: v5e
topology: v5e:2x2
jax: 0.10.0
libtpu: 0.0.40
codegen_flags: <defaults>
</compile_context>

<pallas_src>
import functools

import jax
import jax.numpy as jnp
from jax.experimental import pallas as pl
from jax.experimental.pallas import tpu as pltpu


def _round_up(x, m):
    return (x + m - 1) // m * m


def _metapath_attention_kernel(ui_ref, mp_ref,
                               w1ui_ref, w1m_ref, b1_ref, w2_ref, b2_ref,
                               out_ref, *, metapath_type_num):
    P = metapath_type_num
    ui = ui_ref[...]                       # [TB, 2D]
    mp = mp_ref[...]                       # [P, TB, D]
    TB = ui.shape[0]
    D = mp.shape[2]
    A = w1m_ref.shape[1]

    # Shared part of dense_layer_1(concat(user, item, metapath_p)):
    #   concat @ W1^T == ui @ w1ui + mp_p @ w1m
    base = (jnp.dot(ui, w1ui_ref[...], preferred_element_type=jnp.float32)
            + b1_ref[...])                                  # [TB, A]

    # One fused MXU matmul covering all P metapaths (M = P*TB).
    hm = jnp.dot(mp.reshape(P * TB, D), w1m_ref[...],
                 preferred_element_type=jnp.float32)        # [P*TB, A]
    hm = hm.reshape(P, TB, A)

    w2_row = w2_ref[...]                   # [1, A]
    b2 = b2_ref[...]                       # [1, 1]

    # dense_layer_2 as a VPU multiply + lane reduction, unrolled over small P.
    scores = []
    for p in range(P):
        h = jnp.maximum(base + hm[p], 0.0)                  # relu -> [TB, A]
        s = jnp.sum(h * w2_row, axis=-1, keepdims=True) + b2
        scores.append(jnp.maximum(s, 0.0))                  # relu -> [TB, 1]

    # softmax over the metapath axis (unrolled; P terms of [TB, 1]).
    m = scores[0]
    for p in range(1, P):
        m = jnp.maximum(m, scores[p])
    exps = [jnp.exp(s - m) for s in scores]
    denom = exps[0]
    for p in range(1, P):
        denom = denom + exps[p]
    inv = pl.reciprocal(denom, approx=True)                 # EUP vrcp, [TB, 1]

    # weighted sum over metapaths: P lane-dense [TB, D] FMAs on the VPU.
    acc = mp[0] * (exps[0] * inv)
    for p in range(1, P):
        acc = acc + mp[p] * (exps[p] * inv)
    out_ref[...] = acc.astype(out_ref.dtype)


def metapath_attention(user_latent, item_latent, metapath_latent, params,
                       *, block_b=256):
    B, D = user_latent.shape
    P = metapath_latent.shape[1]
    A = params["w1ui"].shape[1]

    # Host-side layout plumbing (outside the kernel).
    ui = jnp.concatenate([user_latent, item_latent], axis=1)       # [B, 2D]
    mp = jnp.transpose(metapath_latent, (1, 0, 2))                 # [P, B, D]

    # Batch tile: multiple of 8 sublanes; pad B to a whole number of tiles
    # (padded rows produce finite garbage and are sliced off afterwards).
    tb = min(block_b, _round_up(B, 8))
    Bp = _round_up(B, tb)
    if Bp != B:
        ui = jnp.pad(ui, ((0, Bp - B), (0, 0)))
        mp = jnp.pad(mp, ((0, 0), (0, Bp - B), (0, 0)))

    kernel = functools.partial(_metapath_attention_kernel,
                               metapath_type_num=P)

    def full(shape):
        return pl.BlockSpec(shape, lambda i, _s=len(shape): (0,) * _s)

    out = pl.pallas_call(
        kernel,
        out_shape=jax.ShapeDtypeStruct((Bp, D), user_latent.dtype),
        grid=(Bp // tb,),
        in_specs=[
            pl.BlockSpec((tb, 2 * D), lambda i: (i, 0)),           # ui
            pl.BlockSpec((P, tb, D), lambda i: (0, i, 0)),         # metapath
            full((2 * D, A)),                                      # w1ui
            full((D, A)),                                          # w1m
            full((1, A)),                                          # b1
            full((1, A)),                                          # w2 (row)
            full((1, 1)),                                          # b2
        ],
        out_specs=pl.BlockSpec((tb, D), lambda i: (i, 0)),
        compiler_params=pltpu.CompilerParams(
            dimension_semantics=("parallel",)),
    )(ui, mp, params["w1ui"], params["w1m"], params["b1"],
      params["w2"], params["b2"])
    return out[:B]


def init_params(key, att_size, latent_dim):
    """Deterministic parameter init mirroring the PyTorch module shapes."""
    k1, k2, k3, k4 = jax.random.split(key, 4)
    fan_in1, fan_out1 = latent_dim * 3, att_size
    std1 = (2.0 / (fan_in1 + fan_out1)) ** 0.5            # xavier_normal_
    W1 = jax.random.normal(k1, (att_size, latent_dim * 3), jnp.float32) * std1
    fan_in2, fan_out2 = att_size, 1
    std2 = (2.0 / (fan_in2 + fan_out2)) ** 0.5
    W2 = jax.random.normal(k2, (1, att_size), jnp.float32) * std2
    # Linear default bias init: U(-1/sqrt(fan_in), 1/sqrt(fan_in))
    b1 = jax.random.uniform(k3, (1, att_size), jnp.float32,
                            -1.0 / fan_in1 ** 0.5, 1.0 / fan_in1 ** 0.5)
    b2 = jax.random.uniform(k4, (1, 1), jnp.float32,
                            -1.0 / fan_in2 ** 0.5, 1.0 / fan_in2 ** 0.5)
    W1T = W1.T                                            # [3D, A]
    return {
        "w1ui": W1T[:2 * latent_dim],   # [2D, A]  user ++ item segment
        "w1m": W1T[2 * latent_dim:],    # [D, A]   metapath segment
        "b1": b1,                       # [1, A]
        "w2": W2,                       # [1, A]   row layout (VPU reduce)
        "b2": b2,                       # [1, 1]
    }


def reference(user_latent, item_latent, metapath_latent, params):
    """Pure-JAX reference of the PyTorch forward (for a sanity check)."""
    P = metapath_latent.shape[1]
    W1 = jnp.concatenate([params["w1ui"], params["w1m"]], axis=0)  # [3D, A]
    scores = []
    for i in range(P):
        x = jnp.concatenate(
            [user_latent, item_latent, metapath_latent[:, i, :]], axis=1)
        h = jax.nn.relu(x @ W1 + params["b1"])
        s = jax.nn.relu(h @ params["w2"].T + params["b2"])
        scores.append(s)
    scores = jnp.concatenate(scores, axis=1)
    att = jax.nn.softmax(scores, axis=1)
    return jnp.sum(metapath_latent * att[:, :, None], axis=1)


if __name__ == "__main__":
    B, latent_dim, att_size, metapath_type_num = 8, 32, 32, 4

    key = jax.random.PRNGKey(0)
    k_u, k_i, k_m, k_p = jax.random.split(key, 4)
    user_latent = jax.random.normal(k_u, (B, latent_dim), jnp.float32)
    item_latent = jax.random.normal(k_i, (B, latent_dim), jnp.float32)
    metapath_latent = jax.random.normal(
        k_m, (B, metapath_type_num, latent_dim), jnp.float32)

    params = init_params(k_p, att_size, latent_dim)

    out = metapath_attention(user_latent, item_latent, metapath_latent, params)
    out = jax.block_until_ready(out)

    ref = reference(user_latent, item_latent, metapath_latent, params)
    assert out.shape == (B, latent_dim)
    # approx reciprocal in the softmax denominator => relaxed tolerance.
    assert jnp.allclose(out, ref, atol=5e-3, rtol=5e-3), (
        float(jnp.max(jnp.abs(out - ref))))
    print("KERNEL_OK")
</pallas_src>

<mosaic_0001>
module attributes {stable_mosaic.version = 11 : i64} {
  func.func @_metapath_attention_kernel(%arg0: i32, %arg1: memref<8x64xf32, #tpu.memory_space<vmem>>, %arg2: memref<4x8x32xf32, #tpu.memory_space<vmem>>, %arg3: memref<64x32xf32, #tpu.memory_space<vmem>>, %arg4: memref<32x32xf32, #tpu.memory_space<vmem>>, %arg5: memref<1x32xf32, #tpu.memory_space<vmem>>, %arg6: memref<1x32xf32, #tpu.memory_space<vmem>>, %arg7: memref<1x1xf32, #tpu.memory_space<vmem>>, %arg8: memref<8x32xf32, #tpu.memory_space<vmem>>) attributes {dimension_semantics = [#tpu.dimension_semantics<parallel>], iteration_bounds = array<i64: 1>, scalar_prefetch = 0 : i64, scratch_operands = 0 : i64, tpu.core_type = #tpu.core_type<tc>, window_params = [{transform_indices = @transform_0, window_bounds = array<i64: 8, 64>}, {transform_indices = @transform_1, window_bounds = array<i64: 4, 8, 32>}, {pipeline_mode = #tpu.pipeline_mode<synchronous>, transform_indices = @transform_2, window_bounds = array<i64: 64, 32>}, {pipeline_mode = #tpu.pipeline_mode<synchronous>, transform_indices = @transform_3, window_bounds = array<i64: 32, 32>}, {pipeline_mode = #tpu.pipeline_mode<synchronous>, transform_indices = @transform_4, window_bounds = array<i64: 1, 32>}, {pipeline_mode = #tpu.pipeline_mode<synchronous>, transform_indices = @transform_5, window_bounds = array<i64: 1, 32>}, {pipeline_mode = #tpu.pipeline_mode<synchronous>, transform_indices = @transform_6, window_bounds = array<i64: 1, 1>}, {transform_indices = @transform_7, window_bounds = array<i64: 8, 32>}]} {
    %c0 = arith.constant 0 : index
    %c0_0 = arith.constant 0 : index
    %0 = vector.load %arg1[%c0, %c0_0] : memref<8x64xf32, #tpu.memory_space<vmem>>, vector<8x64xf32>
    %c0_1 = arith.constant 0 : index
    %c0_2 = arith.constant 0 : index
    %c0_3 = arith.constant 0 : index
    %1 = vector.load %arg2[%c0_1, %c0_2, %c0_3] : memref<4x8x32xf32, #tpu.memory_space<vmem>>, vector<4x8x32xf32>
    %c0_4 = arith.constant 0 : index
    %c0_5 = arith.constant 0 : index
    %2 = vector.load %arg3[%c0_4, %c0_5] : memref<64x32xf32, #tpu.memory_space<vmem>>, vector<64x32xf32>
    %cst = arith.constant dense<0.000000e+00> : vector<8x32xf32>
    %3 = tpu.matmul %0, %2, %cst {dimension_numbers = #tpu.dot_dimension_numbers<[1], [0], [0], [1], [0, 0, 1, 1], [], []>} : vector<8x64xf32>, vector<64x32xf32>, vector<8x32xf32> -> vector<8x32xf32>
    %c0_6 = arith.constant 0 : index
    %c0_7 = arith.constant 0 : index
    %4 = vector.load %arg5[%c0_6, %c0_7] : memref<1x32xf32, #tpu.memory_space<vmem>>, vector<1x32xf32>
    %5 = vector.broadcast %4 : vector<1x32xf32> to vector<8x32xf32>
    %6 = arith.addf %3, %5 : vector<8x32xf32>
    %7 = vector.shape_cast %1 : vector<4x8x32xf32> to vector<32x32xf32>
    %c0_8 = arith.constant 0 : index
    %c0_9 = arith.constant 0 : index
    %8 = vector.load %arg4[%c0_8, %c0_9] : memref<32x32xf32, #tpu.memory_space<vmem>>, vector<32x32xf32>
    %cst_10 = arith.constant dense<0.000000e+00> : vector<32x32xf32>
    %9 = tpu.matmul %7, %8, %cst_10 {dimension_numbers = #tpu.dot_dimension_numbers<[1], [0], [0], [1], [0, 0, 1, 1], [], []>} : vector<32x32xf32>, vector<32x32xf32>, vector<32x32xf32> -> vector<32x32xf32>
    %10 = vector.shape_cast %9 : vector<32x32xf32> to vector<4x8x32xf32>
    %c0_11 = arith.constant 0 : index
    %c0_12 = arith.constant 0 : index
    %11 = vector.load %arg6[%c0_11, %c0_12] : memref<1x32xf32, #tpu.memory_space<vmem>>, vector<1x32xf32>
    %c0_13 = arith.constant 0 : index
    %c0_14 = arith.constant 0 : index
    %12 = vector.load %arg7[%c0_13, %c0_14] : memref<1x1xf32, #tpu.memory_space<vmem>>, vector<1x1xf32>
    %13 = vector.extract_strided_slice %10 {offsets = [0, 0, 0], sizes = [1, 8, 32], strides = [1, 1, 1]} : vector<4x8x32xf32> to vector<1x8x32xf32>
    %14 = vector.shape_cast %13 : vector<1x8x32xf32> to vector<8x32xf32>
    %15 = arith.addf %6, %14 : vector<8x32xf32>
    %cst_15 = arith.constant 0.000000e+00 : f32
    %16 = vector.broadcast %cst_15 : f32 to vector<8x32xf32>
    %17 = arith.maximumf %15, %16 : vector<8x32xf32>
    %18 = vector.broadcast %11 : vector<1x32xf32> to vector<8x32xf32>
    %19 = arith.mulf %17, %18 : vector<8x32xf32>
    %cst_16 = arith.constant dense<0.000000e+00> : vector<8xf32>
    %20 = vector.multi_reduction <add>, %19, %cst_16 [1] : vector<8x32xf32> to vector<8xf32>
    %21 = vector.shape_cast %20 : vector<8xf32> to vector<8x1xf32>
    %22 = vector.broadcast %12 : vector<1x1xf32> to vector<8x1xf32>
    %23 = arith.addf %21, %22 : vector<8x1xf32>
    %cst_17 = arith.constant 0.000000e+00 : f32
    %24 = vector.broadcast %cst_17 : f32 to vector<8x1xf32>
    %25 = arith.maximumf %23, %24 : vector<8x1xf32>
    %26 = vector.extract_strided_slice %10 {offsets = [1, 0, 0], sizes = [1, 8, 32], strides = [1, 1, 1]} : vector<4x8x32xf32> to vector<1x8x32xf32>
    %27 = vector.shape_cast %26 : vector<1x8x32xf32> to vector<8x32xf32>
    %28 = arith.addf %6, %27 : vector<8x32xf32>
    %cst_18 = arith.constant 0.000000e+00 : f32
    %29 = vector.broadcast %cst_18 : f32 to vector<8x32xf32>
    %30 = arith.maximumf %28, %29 : vector<8x32xf32>
    %31 = vector.broadcast %11 : vector<1x32xf32> to vector<8x32xf32>
    %32 = arith.mulf %30, %31 : vector<8x32xf32>
    %cst_19 = arith.constant dense<0.000000e+00> : vector<8xf32>
    %33 = vector.multi_reduction <add>, %32, %cst_19 [1] : vector<8x32xf32> to vector<8xf32>
    %34 = vector.shape_cast %33 : vector<8xf32> to vector<8x1xf32>
    %35 = vector.broadcast %12 : vector<1x1xf32> to vector<8x1xf32>
    %36 = arith.addf %34, %35 : vector<8x1xf32>
    %cst_20 = arith.constant 0.000000e+00 : f32
    %37 = vector.broadcast %cst_20 : f32 to vector<8x1xf32>
    %38 = arith.maximumf %36, %37 : vector<8x1xf32>
    %39 = vector.extract_strided_slice %10 {offsets = [2, 0, 0], sizes = [1, 8, 32], strides = [1, 1, 1]} : vector<4x8x32xf32> to vector<1x8x32xf32>
    %40 = vector.shape_cast %39 : vector<1x8x32xf32> to vector<8x32xf32>
    %41 = arith.addf %6, %40 : vector<8x32xf32>
    %cst_21 = arith.constant 0.000000e+00 : f32
    %42 = vector.broadcast %cst_21 : f32 to vector<8x32xf32>
    %43 = arith.maximumf %41, %42 : vector<8x32xf32>
    %44 = vector.broadcast %11 : vector<1x32xf32> to vector<8x32xf32>
    %45 = arith.mulf %43, %44 : vector<8x32xf32>
    %cst_22 = arith.constant dense<0.000000e+00> : vector<8xf32>
    %46 = vector.multi_reduction <add>, %45, %cst_22 [1] : vector<8x32xf32> to vector<8xf32>
    %47 = vector.shape_cast %46 : vector<8xf32> to vector<8x1xf32>
    %48 = vector.broadcast %12 : vector<1x1xf32> to vector<8x1xf32>
    %49 = arith.addf %47, %48 : vector<8x1xf32>
    %cst_23 = arith.constant 0.000000e+00 : f32
    %50 = vector.broadcast %cst_23 : f32 to vector<8x1xf32>
    %51 = arith.maximumf %49, %50 : vector<8x1xf32>
    %52 = vector.extract_strided_slice %10 {offsets = [3, 0, 0], sizes = [1, 8, 32], strides = [1, 1, 1]} : vector<4x8x32xf32> to vector<1x8x32xf32>
    %53 = vector.shape_cast %52 : vector<1x8x32xf32> to vector<8x32xf32>
    %54 = arith.addf %6, %53 : vector<8x32xf32>
    %cst_24 = arith.constant 0.000000e+00 : f32
    %55 = vector.broadcast %cst_24 : f32 to vector<8x32xf32>
    %56 = arith.maximumf %54, %55 : vector<8x32xf32>
    %57 = vector.broadcast %11 : vector<1x32xf32> to vector<8x32xf32>
    %58 = arith.mulf %56, %57 : vector<8x32xf32>
    %cst_25 = arith.constant dense<0.000000e+00> : vector<8xf32>
    %59 = vector.multi_reduction <add>, %58, %cst_25 [1] : vector<8x32xf32> to vector<8xf32>
    %60 = vector.shape_cast %59 : vector<8xf32> to vector<8x1xf32>
    %61 = vector.broadcast %12 : vector<1x1xf32> to vector<8x1xf32>
    %62 = arith.addf %60, %61 : vector<8x1xf32>
    %cst_26 = arith.constant 0.000000e+00 : f32
    %63 = vector.broadcast %cst_26 : f32 to vector<8x1xf32>
    %64 = arith.maximumf %62, %63 : vector<8x1xf32>
    %65 = arith.maximumf %25, %38 : vector<8x1xf32>
    %66 = arith.maximumf %65, %51 : vector<8x1xf32>
    %67 = arith.maximumf %66, %64 : vector<8x1xf32>
    %68 = arith.subf %25, %67 : vector<8x1xf32>
    %69 = math.exp %68 : vector<8x1xf32>
    %70 = arith.subf %38, %67 : vector<8x1xf32>
    %71 = math.exp %70 : vector<8x1xf32>
    %72 = arith.subf %51, %67 : vector<8x1xf32>
    %73 = math.exp %72 : vector<8x1xf32>
    %74 = arith.subf %64, %67 : vector<8x1xf32>
    %75 = math.exp %74 : vector<8x1xf32>
    %76 = arith.addf %69, %71 : vector<8x1xf32>
    %77 = arith.addf %76, %73 : vector<8x1xf32>
    %78 = arith.addf %77, %75 : vector<8x1xf32>
    %79 = tpu.reciprocal %78 {approx = true} : vector<8x1xf32> -> vector<8x1xf32>
    %80 = vector.extract_strided_slice %1 {offsets = [0, 0, 0], sizes = [1, 8, 32], strides = [1, 1, 1]} : vector<4x8x32xf32> to vector<1x8x32xf32>
    %81 = vector.shape_cast %80 : vector<1x8x32xf32> to vector<8x32xf32>
    %82 = arith.mulf %69, %79 : vector<8x1xf32>
    %83 = vector.broadcast %82 : vector<8x1xf32> to vector<8x32xf32>
    %84 = arith.mulf %81, %83 : vector<8x32xf32>
    %85 = vector.extract_strided_slice %1 {offsets = [1, 0, 0], sizes = [1, 8, 32], strides = [1, 1, 1]} : vector<4x8x32xf32> to vector<1x8x32xf32>
    %86 = vector.shape_cast %85 : vector<1x8x32xf32> to vector<8x32xf32>
    %87 = arith.mulf %71, %79 : vector<8x1xf32>
    %88 = vector.broadcast %87 : vector<8x1xf32> to vector<8x32xf32>
    %89 = arith.mulf %86, %88 : vector<8x32xf32>
    %90 = arith.addf %84, %89 : vector<8x32xf32>
    %91 = vector.extract_strided_slice %1 {offsets = [2, 0, 0], sizes = [1, 8, 32], strides = [1, 1, 1]} : vector<4x8x32xf32> to vector<1x8x32xf32>
    %92 = vector.shape_cast %91 : vector<1x8x32xf32> to vector<8x32xf32>
    %93 = arith.mulf %73, %79 : vector<8x1xf32>
    %94 = vector.broadcast %93 : vector<8x1xf32> to vector<8x32xf32>
    %95 = arith.mulf %92, %94 : vector<8x32xf32>
    %96 = arith.addf %90, %95 : vector<8x32xf32>
    %97 = vector.extract_strided_slice %1 {offsets = [3, 0, 0], sizes = [1, 8, 32], strides = [1, 1, 1]} : vector<4x8x32xf32> to vector<1x8x32xf32>
    %98 = vector.shape_cast %97 : vector<1x8x32xf32> to vector<8x32xf32>
    %99 = arith.mulf %75, %79 : vector<8x1xf32>
    %100 = vector.broadcast %99 : vector<8x1xf32> to vector<8x32xf32>
    %101 = arith.mulf %98, %100 : vector<8x32xf32>
    %102 = arith.addf %96, %101 : vector<8x32xf32>
    %c0_27 = arith.constant 0 : index
    %c0_28 = arith.constant 0 : index
    %103 = vector.load %arg8[%c0_27, %c0_28] : memref<8x32xf32, #tpu.memory_space<vmem>>, vector<8x32xf32>
    tpu.vector_store %arg8[%c0_27, %c0_28], %102 {strides = array<i32>} : memref<8x32xf32, #tpu.memory_space<vmem>>, vector<8x32xf32>,
    return
  }
  func.func @transform_0(%arg0: i32) -> (i32, i32) {
    %c0_i32 = arith.constant 0 : i32
    %c0_i32_0 = arith.constant 0 : i32
    return %arg0, %c0_i32 : i32, i32
  }
  func.func @transform_1(%arg0: i32) -> (i32, i32, i32) {
    %c0_i32 = arith.constant 0 : i32
    %c0_i32_0 = arith.constant 0 : i32
    %c0_i32_1 = arith.constant 0 : i32
    return %c0_i32, %arg0, %c0_i32_0 : i32, i32, i32
  }
  func.func @transform_2(%arg0: i32) -> (i32, i32) {
    %c0_i32 = arith.constant 0 : i32
    %c0_i32_0 = arith.constant 0 : i32
    %c0_i32_1 = arith.constant 0 : i32
    return %c0_i32, %c0_i32_0 : i32, i32
  }
  func.func @transform_3(%arg0: i32) -> (i32, i32) {
    %c0_i32 = arith.constant 0 : i32
    %c0_i32_0 = arith.constant 0 : i32
    %c0_i32_1 = arith.constant 0 : i32
    return %c0_i32, %c0_i32_0 : i32, i32
  }
  func.func @transform_4(%arg0: i32) -> (i32, i32) {
    %c0_i32 = arith.constant 0 : i32
    %c0_i32_0 = arith.constant 0 : i32
    %c0_i32_1 = arith.constant 0 : i32
    return %c0_i32, %c0_i32_0 : i32, i32
  }
  func.func @transform_5(%arg0: i32) -> (i32, i32) {
    %c0_i32 = arith.constant 0 : i32
    %c0_i32_0 = arith.constant 0 : i32
    %c0_i32_1 = arith.constant 0 : i32
    return %c0_i32, %c0_i32_0 : i32, i32
  }
  func.func @transform_6(%arg0: i32) -> (i32, i32) {
    %c0_i32 = arith.constant 0 : i32
    %c0_i32_0 = arith.constant 0 : i32
    %c0_i32_1 = arith.constant 0 : i32
    return %c0_i32, %c0_i32_0 : i32, i32
  }
  func.func @transform_7(%arg0: i32) -> (i32, i32) {
    %c0_i32 = arith.constant 0 : i32
    %c0_i32_0 = arith.constant 0 : i32
    return %arg0, %c0_i32 : i32, i32
  }
}

</mosaic_0001>

<llo_original>
// kernel: tpu_custom_call.1
$region0: #{tpu_custom_call.1}
  #allocation0 [shape = 'u32[]', space=smem, size = 0x4, offset = 0x4, fixed_abs, tag = 'smem constant byte address 0x4 - core index']
  #allocation1 [shape = 'u32[72,128]{1,0:T(1,128)}', space=vmem, size = 0x9000, scoped, tag = 'internal scratch']
  #allocation2 [shape = 'f32[1,1]{1,0:T(1,128)S(1)}', space=vmem, size = 0x200, scoped, tag = 'scoped memory for tpu_custom_call.1']
  %s0 = inlined_call_operand.vmem [shape: f32[8,64], index: 0, kind: input, shape index: {}]
  %s1 = inlined_call_operand.vmem [shape: f32[4,8,32], index: 1, kind: input, shape index: {}]
  %s2 = inlined_call_operand.vmem [shape: f32[64,32], index: 2, kind: input, shape index: {}]
  %s3 = inlined_call_operand.vmem [shape: f32[32,32], index: 3, kind: input, shape index: {}]
  %s4 = inlined_call_operand.vmem [shape: f32[1,32], index: 4, kind: input, shape index: {}]
  %s5 = inlined_call_operand.vmem [shape: f32[1,32], index: 5, kind: input, shape index: {}]
  %s6 = inlined_call_operand.<no memory space> [shape: f32[1,1], index: 6, kind: input, shape index: {}]
  %s7 = inlined_call_operand.hbm [shape: f32[8,32], index: 7, kind: output, shape index: {}]
  %s8 = sld [smem:[#allocation0]]
  $region38: #{tpu_custom_call.1} parent=0
    _
  %s10 = ssub.s32 1, %s8
  %s11 = scalar_select 0, %s10, %s8
  %v12 = vstv %s6
  %13 = vst [vmem:[#allocation2] sm:$0x1] %v12
  $region1: #{tpu_custom_call.1} parent=0
    #allocation3 [shape = 'u8[4096]{0}', space=vmem, size = 0x1000, scoped, tag = 'output window, operand 0, single buffered']
    #allocation4 [shape = 's32[1]{0}', space=sflag, size = 0x4, scoped, tag = 'scoped memory for tpu_custom_call.1']
    %14 = vsyncpa [#allocation4], 0
    // Predicated region
    $region2: #{tpu_custom_call.1} parent=1 // pred_check
      _
    $region3: #{tpu_custom_call.1} parent=1 // pred_check_branch
      %16 = sbr.rel (0) target = $region5
    $region4: #{tpu_custom_call.1} parent=1 // pred_region
      _
    $region5: #{tpu_custom_call.1} parent=1 // pred_fallthru
      _
    // Predicated region
    $region6: #{tpu_custom_call.1} parent=1 // pred_check
      _
    $region7: #{tpu_custom_call.1} parent=1 // pred_check_branch
      %18 = sbr.rel (0) target = $region9
    $region8: #{tpu_custom_call.1} parent=1 // pred_region
      _
    $region9: #{tpu_custom_call.1} parent=1 // pred_fallthru
      _
    // Predicated region
    $region10: #{tpu_custom_call.1} parent=1 // pred_check
      _
    $region11: #{tpu_custom_call.1} parent=1 // pred_check_branch
      %20 = sbr.rel (0) target = $region13
    $region12: #{tpu_custom_call.1} parent=1 // pred_region
      _
    $region13: #{tpu_custom_call.1} parent=1 // pred_fallthru
      _
    // Predicated region
    $region14: #{tpu_custom_call.1} parent=1 // pred_check
      _
    $region15: #{tpu_custom_call.1} parent=1 // pred_check_branch
      %22 = sbr.rel (0) target = $region17
    $region16: #{tpu_custom_call.1} parent=1 // pred_region
      _
    $region17: #{tpu_custom_call.1} parent=1 // pred_fallthru
      _
    // Predicated region
    $region18: #{tpu_custom_call.1} parent=1 // pred_check
      _
    $region19: #{tpu_custom_call.1} parent=1 // pred_check_branch
      %24 = sbr.rel (0) target = $region21
    $region20: #{tpu_custom_call.1} parent=1 // pred_region
      _
    $region21: #{tpu_custom_call.1} parent=1 // pred_fallthru
      _
    // Predicated region
    $region22: #{tpu_custom_call.1} parent=1 // pred_check
      _
    $region23: #{tpu_custom_call.1} parent=1 // pred_check_branch
      %26 = sbr.rel (0) target = $region25
    $region24: #{tpu_custom_call.1} parent=1 // pred_region
      _
    $region25: #{tpu_custom_call.1} parent=1 // pred_fallthru
      _
    // Predicated region
    $region26: #{tpu_custom_call.1} parent=1 // pred_check
      _
    $region27: #{tpu_custom_call.1} parent=1 // pred_check_branch
      %28 = sbr.rel (0) target = $region29
    $region28: #{tpu_custom_call.1} parent=1 // pred_region
      _
    $region29: #{tpu_custom_call.1} parent=1 // pred_fallthru
      _
    %v29 = vld [vmem:[%s0] sm:$0xff]
    %v30 = vld [vmem:[%s1] sm:$0xff]
    %v31 = vld [vmem:[%s1 + $0x8] sm:$0xff]
    %v32 = vld [vmem:[%s1 + $0x10] sm:$0xff]
    %v33 = vld [vmem:[%s1 + $0x18] sm:$0xff]
    %v34 = vld [vmem:[%s2] sm:$0xff]
    %v35 = vld [vmem:[%s2 + $0x8] sm:$0xff]
    %v36 = vld [vmem:[%s2 + $0x10] sm:$0xff]
    %v37 = vld [vmem:[%s2 + $0x18] sm:$0xff]
    %v38 = vld [vmem:[%s2 + $0x20] sm:$0xff]
    %v39 = vld [vmem:[%s2 + $0x28] sm:$0xff]
    %v40 = vld [vmem:[%s2 + $0x30] sm:$0xff]
    %v41 = vld [vmem:[%s2 + $0x38] sm:$0xff]
    %v42 = vld [vmem:[%s4] sm:$0x1]
    %v44 = vperm.slane %v42, 0
    %vm46 = vcmask 523264
    %v48 = vsel %vm46, %v29, 0
    %50 = vmatpush.msra.mxu0 0.0
    %51 = vmatpush.msra.mxu0 0.0
    %52 = vmatpush.msra.mxu0 0.0
    %53 = vmatpush.msra.mxu0 0.0
    %54 = vmatpush.msra.mxu0 0.0
    %55 = vmatpush.msra.mxu0 0.0
    %56 = vmatpush.msra.mxu0 0.0
    %57 = vmatpush.msra.mxu0 0.0
    %58 = vmatpush.msra.mxu0 %v41
    %59 = vmatpush.msra.mxu0 %v40
    %60 = vmatpush.msra.mxu0 %v39
    %61 = vmatpush.msra.mxu0 %v38
    %62 = vmatpush.msra.mxu0 %v37
    %63 = vmatpush.msra.mxu0 %v36
    %64 = vmatpush.msra.mxu0 %v35
    %65 = vmatpush.msra.mxu0 %v34
    %66 = vmatmul.f32.gmra.mxu0 %v48
    %v67 = vpop.f32.mrf.mxu0
    %v68 = vadd.f32 %v44, %v67
    %69 = vdwg.mxu0
    %v70 = vld [vmem:[%s3] sm:$0xff]
    %v71 = vld [vmem:[%s3 + $0x8] sm:$0xff]
    %v72 = vld [vmem:[%s3 + $0x10] sm:$0xff]
    %v73 = vld [vmem:[%s3 + $0x18] sm:$0xff]
    %vm74 = vcmask 261120
    %v76 = vsel %vm74, %v30, 0
    %v79 = vsel %vm74, %v31, 0
    %v82 = vsel %vm74, %v32, 0
    %v85 = vsel %vm74, %v33, 0
    %87 = vmatpush.msra.mxu0 0.0
    %88 = vmatpush.msra.mxu0 0.0
    %89 = vmatpush.msra.mxu0 0.0
    %90 = vmatpush.msra.mxu0 0.0
    %91 = vmatpush.msra.mxu0 0.0
    %92 = vmatpush.msra.mxu0 0.0
    %93 = vmatpush.msra.mxu0 0.0
    %94 = vmatpush.msra.mxu0 0.0
    %95 = vmatpush.msra.mxu0 0.0
    %96 = vmatpush.msra.mxu0 0.0
    %97 = vmatpush.msra.mxu0 0.0
    %98 = vmatpush.msra.mxu0 0.0
    %99 = vmatpush.msra.mxu0 %v73
    %100 = vmatpush.msra.mxu0 %v72
    %101 = vmatpush.msra.mxu0 %v71
    %102 = vmatpush.msra.mxu0 %v70
    %103 = vmatmul.f32.gmra.mxu0 %v76
    %v104 = vpop.f32.mrf.mxu0
    %v105 = vadd.f32 0.0, %v104
    %106 = vmatmul.f32.gmra.mxu0 %v79
    %v107 = vpop.f32.mrf.mxu0
    %v108 = vadd.f32 0.0, %v107
    %109 = vmatmul.f32.gmra.mxu0 %v82
    %v110 = vpop.f32.mrf.mxu0
    %v111 = vadd.f32 0.0, %v110
    %112 = vmatmul.f32.gmra.mxu0 %v85
    %v113 = vpop.f32.mrf.mxu0
    %v114 = vadd.f32 0.0, %v113
    %115 = vdwg.mxu0
    %v116 = vld [vmem:[%s5] sm:$0x1]
    %v117 = vld [vmem:[#allocation2] sm:$0x1]
    %v118 = vadd.f32 %v68, %v105
    %v119 = vmax.f32 %v118, 0.0
    %v121 = vperm.slane %v116, 0
    %v123 = vmul.f32 %v119, %v121
    %v124 = vsel %vm74, %v123, 0.0
    %125 = vadd.xlane.f32.xlu0 %v124
    %v126 = vpop.xlane.xlu0 %125
    %v128 = vperm.slane %v117, 0
    %v130 = vadd.f32 %v126, %v128
    %v131 = vmax.f32 %v130, 0.0
    %v132 = vadd.f32 %v68, %v108
    %v133 = vmax.f32 %v132, 0.0
    %v134 = vmul.f32 %v133, %v121
    %v135 = vsel %vm74, %v134, 0.0
    %136 = vadd.xlane.f32.xlu0 %v135
    %v137 = vpop.xlane.xlu0 %136
    %v138 = vadd.f32 %v137, %v128
    %v139 = vmax.f32 %v138, 0.0
    %v140 = vadd.f32 %v68, %v111
    %v141 = vmax.f32 %v140, 0.0
    %v142 = vmul.f32 %v141, %v121
    %v143 = vsel %vm74, %v142, 0.0
    %144 = vadd.xlane.f32.xlu0 %v143
    %v145 = vpop.xlane.xlu0 %144
    %v146 = vadd.f32 %v145, %v128
    %v147 = vmax.f32 %v146, 0.0
    %v148 = vadd.f32 %v68, %v114
    %v149 = vmax.f32 %v148, 0.0
    %v150 = vmul.f32 %v149, %v121
    %v151 = vsel %vm74, %v150, 0.0
    %152 = vadd.xlane.f32.xlu0 %v151
    %v153 = vpop.xlane.xlu0 %152
    %v154 = vadd.f32 %v153, %v128
    %v155 = vmax.f32 %v154, 0.0
    %v156 = vmax.f32 %v131, %v139
    %v157 = vmax.f32 %v156, %v147
    %v158 = vmax.f32 %v157, %v155
    %v159 = vsub.f32 %v131, %v158
    %v160 = vmul.f32 %v159, 1.442695
    %v161 = vpow.pop %v160
    %v162 = vsub.f32 %v139, %v158
    %v163 = vmul.f32 %v162, 1.442695
    %v164 = vpow.pop %v163
    %v165 = vsub.f32 %v147, %v158
    %v166 = vmul.f32 %v165, 1.442695
    %v167 = vpow.pop %v166
    %v168 = vsub.f32 %v155, %v158
    %v169 = vmul.f32 %v168, 1.442695
    %v170 = vpow.pop %v169
    %v171 = vadd.f32 %v161, %v164
    %v172 = vadd.f32 %v171, %v167
    %v173 = vadd.f32 %v172, %v170
    %v174 = vrcp.pop %v173
    %v175 = vmul.f32 %v161, %v174
    %177 = vset.pattern.permute.xlu0 0
    %178 = vperm.xlu0 %177, %v175
    %v179 = vpop.permute.xlu0 %178
    %v181 = vmul.f32 %v30, %v179
    %v182 = vmul.f32 %v164, %v174
    %184 = vset.pattern.permute.xlu0 0
    %185 = vperm.xlu0 %184, %v182
    %v186 = vpop.permute.xlu0 %185
    %v188 = vmul.f32 %v31, %v186
    %v189 = vadd.f32 %v181, %v188
    %v190 = vmul.f32 %v167, %v174
    %192 = vset.pattern.permute.xlu0 0
    %193 = vperm.xlu0 %192, %v190
    %v194 = vpop.permute.xlu0 %193
    %v196 = vmul.f32 %v32, %v194
    %v197 = vadd.f32 %v189, %v196
    %v198 = vmul.f32 %v170, %v174
    %200 = vset.pattern.permute.xlu0 0
    %201 = vperm.xlu0 %200, %v198
    %v202 = vpop.permute.xlu0 %201
    %v204 = vmul.f32 %v33, %v202
    %v205 = vadd.f32 %v197, %v204
    %206 = vst.msk [vmem:[#allocation3] sm:$0xff] %vm74, %v205
    // Predicated region
    $region30: #{tpu_custom_call.1} parent=1 // pred_check
      _
    $region31: #{tpu_custom_call.1} parent=1 // pred_check_branch
      %208 = sbr.rel (0) target = $region33
    $region32: #{tpu_custom_call.1} parent=1 // pred_region
      %210 = vsyncadd [#allocation4], 0
      %s212 = sshll.u32 [#allocation3], 4
      %s213 = int_to_ptr.vmem [resolvable:$true] %s212
      %s214 = sshll.u32 %s7, 4
      %s215 = int_to_ptr.hbm [resolvable:$true] %s214
      %217 = dma.vmem_to_hbm [thread:$0]  %s213, 128, %s215, [#allocation4]
    $region33: #{tpu_custom_call.1} parent=1 // pred_fallthru
      _
    // Predicated region
    $region34: #{tpu_custom_call.1} parent=1 // pred_check
      _
    $region35: #{tpu_custom_call.1} parent=1 // pred_check_branch
      %219 = sbr.rel (0) target = $region37
    $region36: #{tpu_custom_call.1} parent=1 // pred_region
      %221 = dma.done [#allocation4], 128
    $region37: #{tpu_custom_call.1} parent=1 // pred_fallthru
      _
    %222 = vsyncpa [#allocation4], 1

</llo_original>
